<compile_context>
chip_gen: v7x
topology: tpu7x:2x2x1
jax: 0.10.0
libtpu: 0.0.40
codegen_flags: <defaults>
</compile_context>

<pallas_src>
import math

import jax
import jax.numpy as jnp
from jax.experimental import pallas as pl
from jax.experimental.pallas import tpu as pltpu

# ---------------------------------------------------------------------------
# Problem sizes (small, consistent with the module's __init__ signature).
# ---------------------------------------------------------------------------
INPUT_SIZE = 32
HIDDEN_SIZES = (64, 32)
OUTPUT_SIZE = 8
BATCH = 16

INIT_STD = 1.0
MIN_LOG_STD = math.log(1e-6)
MAX_LOG_STD = math.log(1e6)


# ---------------------------------------------------------------------------
# Pallas kernel: fused MLP -> tanh(mu)
# ---------------------------------------------------------------------------
def _policy_kernel(x_ref, w1_ref, b1_ref, w2_ref, b2_ref, wmu_ref, bmu_ref,
                   mu_ref):
    x = x_ref[...]  # already float32 — no cast needed

    # layer1: Linear + ReLU
    h = jnp.dot(x, w1_ref[...], preferred_element_type=jnp.float32) + b1_ref[...]
    h = jnp.maximum(h, 0.0)

    # layer2: Linear + ReLU
    h = jnp.dot(h, w2_ref[...], preferred_element_type=jnp.float32) + b2_ref[...]
    h = jnp.maximum(h, 0.0)

    # mu head: Linear + tanh
    mu = jnp.dot(h, wmu_ref[...], preferred_element_type=jnp.float32) + bmu_ref[...]
    mu_ref[...] = jnp.tanh(mu)


def gaussian_dnn_policy_forward(x, params):
    """Returns (mu, scale) — the loc/scale of the Normal the module returns."""
    b, _ = x.shape
    h1, h2 = HIDDEN_SIZES
    o = OUTPUT_SIZE

    # Single grid step at small batch; tiles of 256 rows once the batch
    # scales (fills the MXU M dimension and lets v7x use both TensorCores).
    batch_tile = b if b <= 256 else 256
    assert b % batch_tile == 0, "batch must be a multiple of the batch tile"
    grid = (b // batch_tile,)

    full = lambda shape: pl.BlockSpec(shape, lambda i: tuple(0 for _ in shape))

    mu = pl.pallas_call(
        _policy_kernel,
        out_shape=jax.ShapeDtypeStruct((b, o), jnp.float32),
        grid_spec=pltpu.PrefetchScalarGridSpec(
            num_scalar_prefetch=0,
            grid=grid,
            in_specs=[
                pl.BlockSpec((batch_tile, INPUT_SIZE), lambda i: (i, 0)),  # x
                full((INPUT_SIZE, h1)),   # w1
                full((1, h1)),            # b1
                full((h1, h2)),           # w2
                full((1, h2)),            # b2
                full((h2, o)),            # w_mu
                full((1, o)),             # b_mu
            ],
            out_specs=pl.BlockSpec((batch_tile, o), lambda i: (i, 0)),  # mu
        ),
        compiler_params=pltpu.CompilerParams(
            dimension_semantics=("parallel",)),
    )(x, params["w1"], params["b1"], params["w2"], params["b2"],
      params["w_mu"], params["b_mu"])

    # scale = exp(clamp(sigma)): 8 batch-independent scalars — computed in the
    # wrapper (XLA fuses it) instead of redundantly inside every kernel step.
    scale = jnp.exp(jnp.clip(params["sigma"][0], MIN_LOG_STD, MAX_LOG_STD))

    # scale broadcasts against mu exactly like torch Normal(loc, scale) would.
    return mu, scale


# ---------------------------------------------------------------------------
# Deterministic parameter init (xavier_uniform with gain sqrt(2), zero bias,
# sigma filled with log(init_std)) — mirrors weight_init in the PyTorch code.
# ---------------------------------------------------------------------------
def _xavier_uniform(key, fan_in, fan_out, gain):
    bound = gain * math.sqrt(6.0 / (fan_in + fan_out))
    # stored as (in, out) so the kernel does x @ W
    return jax.random.uniform(key, (fan_in, fan_out), jnp.float32,
                              minval=-bound, maxval=bound)


def init_params(key):
    k1, k2, k3 = jax.random.split(key, 3)
    gain = math.sqrt(2.0)
    h1, h2 = HIDDEN_SIZES
    return {
        "w1": _xavier_uniform(k1, INPUT_SIZE, h1, gain),
        "b1": jnp.zeros((1, h1), jnp.float32),
        "w2": _xavier_uniform(k2, h1, h2, gain),
        "b2": jnp.zeros((1, h2), jnp.float32),
        "w_mu": _xavier_uniform(k3, h2, OUTPUT_SIZE, gain),
        "b_mu": jnp.zeros((1, OUTPUT_SIZE), jnp.float32),
        "sigma": jnp.full((1, OUTPUT_SIZE), math.log(INIT_STD), jnp.float32),
    }


def reference_forward(x, params):
    h = jnp.maximum(x @ params["w1"] + params["b1"], 0.0)
    h = jnp.maximum(h @ params["w2"] + params["b2"], 0.0)
    mu = jnp.tanh(h @ params["w_mu"] + params["b_mu"])
    scale = jnp.exp(jnp.clip(params["sigma"], MIN_LOG_STD, MAX_LOG_STD))[0]
    return mu, scale


if __name__ == "__main__":
    key = jax.random.PRNGKey(0)
    kp, kx = jax.random.split(key)
    params = init_params(kp)
    x = jax.random.normal(kx, (BATCH, INPUT_SIZE), jnp.float32)

    mu, scale = gaussian_dnn_policy_forward(x, params)
    mu, scale = jax.block_until_ready((mu, scale))

    mu_ref, scale_ref = reference_forward(x, params)
    assert mu.shape == (BATCH, OUTPUT_SIZE)
    assert scale.shape == (OUTPUT_SIZE,)
    assert jnp.allclose(mu, mu_ref, atol=1e-5, rtol=1e-5)
    assert jnp.allclose(scale, scale_ref, atol=1e-6, rtol=1e-6)

    # TODO(synk): torch.distributions.Normal object itself has no Pallas
    # equivalent; we return its (loc, scale) parameters instead.
    print("KERNEL_OK")
</pallas_src>

<mosaic_0001>
module attributes {stable_mosaic.version = 11 : i64} {
  func.func @_policy_kernel(%arg0: i32, %arg1: memref<16x32xf32, #tpu.memory_space<vmem>>, %arg2: memref<32x64xf32, #tpu.memory_space<vmem>>, %arg3: memref<1x64xf32, #tpu.memory_space<vmem>>, %arg4: memref<64x32xf32, #tpu.memory_space<vmem>>, %arg5: memref<1x32xf32, #tpu.memory_space<vmem>>, %arg6: memref<32x8xf32, #tpu.memory_space<vmem>>, %arg7: memref<1x8xf32, #tpu.memory_space<vmem>>, %arg8: memref<16x8xf32, #tpu.memory_space<vmem>>) attributes {dimension_semantics = [#tpu.dimension_semantics<parallel>], iteration_bounds = array<i64: 1>, scalar_prefetch = 0 : i64, scratch_operands = 0 : i64, tpu.core_type = #tpu.core_type<tc>, window_params = [{transform_indices = @transform_0, window_bounds = array<i64: 16, 32>}, {pipeline_mode = #tpu.pipeline_mode<synchronous>, transform_indices = @transform_1, window_bounds = array<i64: 32, 64>}, {pipeline_mode = #tpu.pipeline_mode<synchronous>, transform_indices = @transform_2, window_bounds = array<i64: 1, 64>}, {pipeline_mode = #tpu.pipeline_mode<synchronous>, transform_indices = @transform_3, window_bounds = array<i64: 64, 32>}, {pipeline_mode = #tpu.pipeline_mode<synchronous>, transform_indices = @transform_4, window_bounds = array<i64: 1, 32>}, {pipeline_mode = #tpu.pipeline_mode<synchronous>, transform_indices = @transform_5, window_bounds = array<i64: 32, 8>}, {pipeline_mode = #tpu.pipeline_mode<synchronous>, transform_indices = @transform_6, window_bounds = array<i64: 1, 8>}, {transform_indices = @transform_7, window_bounds = array<i64: 16, 8>}]} {
    %c0 = arith.constant 0 : index
    %c0_0 = arith.constant 0 : index
    %0 = vector.load %arg1[%c0, %c0_0] : memref<16x32xf32, #tpu.memory_space<vmem>>, vector<16x32xf32>
    %c0_1 = arith.constant 0 : index
    %c0_2 = arith.constant 0 : index
    %1 = vector.load %arg2[%c0_1, %c0_2] : memref<32x64xf32, #tpu.memory_space<vmem>>, vector<32x64xf32>
    %cst = arith.constant dense<0.000000e+00> : vector<16x64xf32>
    %2 = tpu.matmul %0, %1, %cst {dimension_numbers = #tpu.dot_dimension_numbers<[1], [0], [0], [1], [0, 0, 1, 1], [], []>} : vector<16x32xf32>, vector<32x64xf32>, vector<16x64xf32> -> vector<16x64xf32>
    %c0_3 = arith.constant 0 : index
    %c0_4 = arith.constant 0 : index
    %3 = vector.load %arg3[%c0_3, %c0_4] : memref<1x64xf32, #tpu.memory_space<vmem>>, vector<1x64xf32>
    %4 = vector.broadcast %3 : vector<1x64xf32> to vector<16x64xf32>
    %5 = arith.addf %2, %4 : vector<16x64xf32>
    %cst_5 = arith.constant 0.000000e+00 : f32
    %6 = vector.broadcast %cst_5 : f32 to vector<16x64xf32>
    %7 = arith.maximumf %5, %6 : vector<16x64xf32>
    %c0_6 = arith.constant 0 : index
    %c0_7 = arith.constant 0 : index
    %8 = vector.load %arg4[%c0_6, %c0_7] : memref<64x32xf32, #tpu.memory_space<vmem>>, vector<64x32xf32>
    %cst_8 = arith.constant dense<0.000000e+00> : vector<16x32xf32>
    %9 = tpu.matmul %7, %8, %cst_8 {dimension_numbers = #tpu.dot_dimension_numbers<[1], [0], [0], [1], [0, 0, 1, 1], [], []>} : vector<16x64xf32>, vector<64x32xf32>, vector<16x32xf32> -> vector<16x32xf32>
    %c0_9 = arith.constant 0 : index
    %c0_10 = arith.constant 0 : index
    %10 = vector.load %arg5[%c0_9, %c0_10] : memref<1x32xf32, #tpu.memory_space<vmem>>, vector<1x32xf32>
    %11 = vector.broadcast %10 : vector<1x32xf32> to vector<16x32xf32>
    %12 = arith.addf %9, %11 : vector<16x32xf32>
    %cst_11 = arith.constant 0.000000e+00 : f32
    %13 = vector.broadcast %cst_11 : f32 to vector<16x32xf32>
    %14 = arith.maximumf %12, %13 : vector<16x32xf32>
    %c0_12 = arith.constant 0 : index
    %c0_13 = arith.constant 0 : index
    %15 = vector.load %arg6[%c0_12, %c0_13] : memref<32x8xf32, #tpu.memory_space<vmem>>, vector<32x8xf32>
    %cst_14 = arith.constant dense<0.000000e+00> : vector<16x8xf32>
    %16 = tpu.matmul %14, %15, %cst_14 {dimension_numbers = #tpu.dot_dimension_numbers<[1], [0], [0], [1], [0, 0, 1, 1], [], []>} : vector<16x32xf32>, vector<32x8xf32>, vector<16x8xf32> -> vector<16x8xf32>
    %c0_15 = arith.constant 0 : index
    %c0_16 = arith.constant 0 : index
    %17 = vector.load %arg7[%c0_15, %c0_16] : memref<1x8xf32, #tpu.memory_space<vmem>>, vector<1x8xf32>
    %18 = vector.broadcast %17 : vector<1x8xf32> to vector<16x8xf32>
    %19 = arith.addf %16, %18 : vector<16x8xf32>
    %20 = math.tanh %19 : vector<16x8xf32>
    %c0_17 = arith.constant 0 : index
    %c0_18 = arith.constant 0 : index
    %21 = vector.load %arg8[%c0_17, %c0_18] : memref<16x8xf32, #tpu.memory_space<vmem>>, vector<16x8xf32>
    tpu.vector_store %arg8[%c0_17, %c0_18], %20 {strides = array<i32>} : memref<16x8xf32, #tpu.memory_space<vmem>>, vector<16x8xf32>,
    return
  }
  func.func @transform_0(%arg0: i32) -> (i32, i32) {
    %c0_i32 = arith.constant 0 : i32
    %c0_i32_0 = arith.constant 0 : i32
    return %arg0, %c0_i32 : i32, i32
  }
  func.func @transform_1(%arg0: i32) -> (i32, i32) {
    %c0_i32 = arith.constant 0 : i32
    %c0_i32_0 = arith.constant 0 : i32
    %c0_i32_1 = arith.constant 0 : i32
    return %c0_i32, %c0_i32_0 : i32, i32
  }
  func.func @transform_2(%arg0: i32) -> (i32, i32) {
    %c0_i32 = arith.constant 0 : i32
    %c0_i32_0 = arith.constant 0 : i32
    %c0_i32_1 = arith.constant 0 : i32
    return %c0_i32, %c0_i32_0 : i32, i32
  }
  func.func @transform_3(%arg0: i32) -> (i32, i32) {
    %c0_i32 = arith.constant 0 : i32
    %c0_i32_0 = arith.constant 0 : i32
    %c0_i32_1 = arith.constant 0 : i32
    return %c0_i32, %c0_i32_0 : i32, i32
  }
  func.func @transform_4(%arg0: i32) -> (i32, i32) {
    %c0_i32 = arith.constant 0 : i32
    %c0_i32_0 = arith.constant 0 : i32
    %c0_i32_1 = arith.constant 0 : i32
    return %c0_i32, %c0_i32_0 : i32, i32
  }
  func.func @transform_5(%arg0: i32) -> (i32, i32) {
    %c0_i32 = arith.constant 0 : i32
    %c0_i32_0 = arith.constant 0 : i32
    %c0_i32_1 = arith.constant 0 : i32
    return %c0_i32, %c0_i32_0 : i32, i32
  }
  func.func @transform_6(%arg0: i32) -> (i32, i32) {
    %c0_i32 = arith.constant 0 : i32
    %c0_i32_0 = arith.constant 0 : i32
    %c0_i32_1 = arith.constant 0 : i32
    return %c0_i32, %c0_i32_0 : i32, i32
  }
  func.func @transform_7(%arg0: i32) -> (i32, i32) {
    %c0_i32 = arith.constant 0 : i32
    %c0_i32_0 = arith.constant 0 : i32
    return %arg0, %c0_i32 : i32, i32
  }
}

</mosaic_0001>

<llo_original>
// kernel: tpu_custom_call.1
$region0: #{tpu_custom_call.1}
  #allocation0 [shape = 'u32[]', space=smem, size = 0x4, offset = 0x4, fixed_abs, tag = 'smem constant byte address 0x4 - core index']
  #allocation1 [shape = 'u32[144,128]{1,0:T(1,128)}', space=vmem, size = 0x12000, scoped, tag = 'internal scratch']
  %s0 = inlined_call_operand.vmem [shape: f32[16,32], index: 0, kind: input, shape index: {}]
  %s1 = inlined_call_operand.vmem [shape: f32[32,64], index: 1, kind: input, shape index: {}]
  %s2 = inlined_call_operand.vmem [shape: f32[1,64], index: 2, kind: input, shape index: {}]
  %s3 = inlined_call_operand.vmem [shape: f32[64,32], index: 3, kind: input, shape index: {}]
  %s4 = inlined_call_operand.vmem [shape: f32[1,32], index: 4, kind: input, shape index: {}]
  %s5 = inlined_call_operand.vmem [shape: f32[32,8], index: 5, kind: input, shape index: {}]
  %s6 = inlined_call_operand.vmem [shape: f32[1,8], index: 6, kind: input, shape index: {}]
  %s7 = inlined_call_operand.vmem [shape: f32[16,8], index: 7, kind: output, shape index: {}]
  %s8 = sld [smem:[#allocation0]]
  $region38: #{tpu_custom_call.1} parent=0
    _
  %s10 = ssub.s32 1, %s8
  %s11 = scalar_select 0, %s10, %s8
  // Predicated region
  $region2: #{tpu_custom_call.1} parent=0 // pred_check
    _
  $region3: #{tpu_custom_call.1} parent=0 // pred_check_branch
    %13 = sbr.rel (0) target = $region5
  $region4: #{tpu_custom_call.1} parent=0 // pred_region
    _
  $region5: #{tpu_custom_call.1} parent=0 // pred_fallthru
    _
  // Predicated region
  $region6: #{tpu_custom_call.1} parent=0 // pred_check
    _
  $region7: #{tpu_custom_call.1} parent=0 // pred_check_branch
    %15 = sbr.rel (0) target = $region9
  $region8: #{tpu_custom_call.1} parent=0 // pred_region
    _
  $region9: #{tpu_custom_call.1} parent=0 // pred_fallthru
    _
  // Predicated region
  $region10: #{tpu_custom_call.1} parent=0 // pred_check
    _
  $region11: #{tpu_custom_call.1} parent=0 // pred_check_branch
    %17 = sbr.rel (0) target = $region13
  $region12: #{tpu_custom_call.1} parent=0 // pred_region
    _
  $region13: #{tpu_custom_call.1} parent=0 // pred_fallthru
    _
  // Predicated region
  $region14: #{tpu_custom_call.1} parent=0 // pred_check
    _
  $region15: #{tpu_custom_call.1} parent=0 // pred_check_branch
    %19 = sbr.rel (0) target = $region17
  $region16: #{tpu_custom_call.1} parent=0 // pred_region
    _
  $region17: #{tpu_custom_call.1} parent=0 // pred_fallthru
    _
  // Predicated region
  $region18: #{tpu_custom_call.1} parent=0 // pred_check
    _
  $region19: #{tpu_custom_call.1} parent=0 // pred_check_branch
    %21 = sbr.rel (0) target = $region21
  $region20: #{tpu_custom_call.1} parent=0 // pred_region
    _
  $region21: #{tpu_custom_call.1} parent=0 // pred_fallthru
    _
  // Predicated region
  $region22: #{tpu_custom_call.1} parent=0 // pred_check
    _
  $region23: #{tpu_custom_call.1} parent=0 // pred_check_branch
    %23 = sbr.rel (0) target = $region25
  $region24: #{tpu_custom_call.1} parent=0 // pred_region
    _
  $region25: #{tpu_custom_call.1} parent=0 // pred_fallthru
    _
  // Predicated region
  $region26: #{tpu_custom_call.1} parent=0 // pred_check
    _
  $region27: #{tpu_custom_call.1} parent=0 // pred_check_branch
    %25 = sbr.rel (0) target = $region29
  $region28: #{tpu_custom_call.1} parent=0 // pred_region
    _
  $region29: #{tpu_custom_call.1} parent=0 // pred_fallthru
    _
  %v26 = vld [vmem:[%s0] sm:$0xff]
  %v27 = vld [vmem:[%s0 + $0x8] sm:$0xff]
  %v28 = vld [vmem:[%s1] sm:$0xff]
  %v29 = vld [vmem:[%s1 + $0x8] sm:$0xff]
  %v30 = vld [vmem:[%s1 + $0x10] sm:$0xff]
  %v31 = vld [vmem:[%s1 + $0x18] sm:$0xff]
  %v32 = vld [vmem:[%s2] sm:$0x1]
  %v34 = vlaneseq
  %v35 = vshrl.u32 %v34, 7
  %v36 = vsub.s32 0, %v35
  %v37 = vrot.slane %v32, %v36
  %vm39 = vcmask 261120
  %v41 = vsel %vm39, %v26, 0
  %v44 = vsel %vm39, %v27, 0
  %46 = vmatprep.subr.mxu0 0.0
  %47 = vmatpush1.msra.mxu0 %v28
  %48 = vmatprep.subr.mxu0 0.0
  %49 = vmatpush1.msra.mxu0 %v29
  %50 = vmatprep.subr.mxu0 0.0
  %51 = vmatpush1.msra.mxu0 %v30
  %52 = vmatprep.subr.mxu0 0.0
  %53 = vmatpush1.msra.mxu0 %v31
  %54 = vmatprep.subr.mxu0 0.0
  %55 = vmatpush1.msra.mxu0 0.0
  %56 = vmatprep.subr.mxu0 0.0
  %57 = vmatpush1.msra.mxu0 0.0
  %58 = vmatprep.subr.mxu0 0.0
  %59 = vmatpush1.msra.mxu0 0.0
  %60 = vmatprep.subr.mxu0 0.0
  %61 = vmatpush1.msra.mxu0 0.0
  %62 = vmatprep.subr.mxu0 0.0
  %63 = vmatpush1.msra.mxu0 0.0
  %64 = vmatprep.subr.mxu0 0.0
  %65 = vmatpush1.msra.mxu0 0.0
  %66 = vmatprep.subr.mxu0 0.0
  %67 = vmatpush1.msra.mxu0 0.0
  %68 = vmatprep.subr.mxu0 0.0
  %69 = vmatpush1.msra.mxu0 0.0
  %70 = vmatprep.subr.mxu0 0.0
  %71 = vmatpush1.msra.mxu0 0.0
  %72 = vmatprep.subr.mxu0 0.0
  %73 = vmatpush1.msra.mxu0 0.0
  %74 = vmatprep.subr.mxu0 0.0
  %75 = vmatpush1.msra.mxu0 0.0
  %76 = vmatprep.subr.mxu0 0.0
  %77 = vmatpush1.msra.mxu0 0.0
  %78 = vmatprep.subr.mxu0 0.0
  %79 = vmatpush1.msra.mxu0 0.0
  %80 = vmatprep.subr.mxu0 0.0
  %81 = vmatpush1.msra.mxu0 0.0
  %82 = vmatprep.subr.mxu0 0.0
  %83 = vmatpush1.msra.mxu0 0.0
  %84 = vmatprep.subr.mxu0 0.0
  %85 = vmatpush1.msra.mxu0 0.0
  %86 = vmatprep.subr.mxu0 0.0
  %87 = vmatpush1.msra.mxu0 0.0
  %88 = vmatprep.subr.mxu0 0.0
  %89 = vmatpush1.msra.mxu0 0.0
  %90 = vmatprep.subr.mxu0 0.0
  %91 = vmatpush1.msra.mxu0 0.0
  %92 = vmatprep.subr.mxu0 0.0
  %93 = vmatpush1.msra.mxu0 0.0
  %94 = vmatprep.subr.mxu0 0.0
  %95 = vmatpush1.msra.mxu0 0.0
  %96 = vmatprep.subr.mxu0 0.0
  %97 = vmatpush1.msra.mxu0 0.0
  %98 = vmatprep.subr.mxu0 0.0
  %99 = vmatpush1.msra.mxu0 0.0
  %100 = vmatprep.subr.mxu0 0.0
  %101 = vmatpush1.msra.mxu0 0.0
  %102 = vmatprep.subr.mxu0 0.0
  %103 = vmatpush1.msra.mxu0 0.0
  %104 = vmatprep.subr.mxu0 0.0
  %105 = vmatpush1.msra.mxu0 0.0
  %106 = vmatprep.subr.mxu0 0.0
  %107 = vmatpush1.msra.mxu0 0.0
  %108 = vmatprep.subr.mxu0 0.0
  %109 = vmatpush1.msra.mxu0 0.0
  %110 = vmatprep.mubr.f32.mxu0 0.0
  %111 = vmatmul.mubr.f32.gmra.mrb[0].mxu0 %v41
  %v112 = vpop.f32.mrb[0].mxu0
  %v113 = vadd.f32 %v37, %v112
  %v114 = vpop.f32.mrb[0].mxu0
  %115 = vmatprep.mubr.f32.mxu0 0.0
  %116 = vmatmul.mubr.f32.gmra.mrb[0].mxu0 %v44
  %v117 = vpop.f32.mrb[0].mxu0
  %v118 = vadd.f32 %v37, %v117
  %v119 = vpop.f32.mrb[0].mxu0
  %120 = vdwg.mxu0
  %v121 = vmax.f32 %v113, 0.0
  %v122 = vmax.f32 %v118, 0.0
  %v123 = vld [vmem:[%s3] sm:$0xff]
  %v124 = vld [vmem:[%s3 + $0x8] sm:$0xff]
  %v125 = vld [vmem:[%s3 + $0x10] sm:$0xff]
  %v126 = vld [vmem:[%s3 + $0x18] sm:$0xff]
  %v127 = vld [vmem:[%s3 + $0x20] sm:$0xff]
  %v128 = vld [vmem:[%s3 + $0x28] sm:$0xff]
  %v129 = vld [vmem:[%s3 + $0x30] sm:$0xff]
  %v130 = vld [vmem:[%s3 + $0x38] sm:$0xff]
  %v131 = vld [vmem:[%s4] sm:$0x1]
  %v133 = vlaneseq
  %v134 = vshrl.u32 %v133, 7
  %v135 = vsub.s32 0, %v134
  %v136 = vrot.slane %v131, %v135
  %vm138 = vcmask 523264
  %v140 = vsel %vm138, %v121, 0
  %v143 = vsel %vm138, %v122, 0
  %145 = vmatprep.subr.mxu0 0.0
  %146 = vmatpush1.msra.mxu0 %v123
  %147 = vmatprep.subr.mxu0 0.0
  %148 = vmatpush1.msra.mxu0 %v124
  %149 = vmatprep.subr.mxu0 0.0
  %150 = vmatpush1.msra.mxu0 %v125
  %151 = vmatprep.subr.mxu0 0.0
  %152 = vmatpush1.msra.mxu0 %v126
  %153 = vmatprep.subr.mxu0 0.0
  %154 = vmatpush1.msra.mxu0 %v127
  %155 = vmatprep.subr.mxu0 0.0
  %156 = vmatpush1.msra.mxu0 %v128
  %157 = vmatprep.subr.mxu0 0.0
  %158 = vmatpush1.msra.mxu0 %v129
  %159 = vmatprep.subr.mxu0 0.0
  %160 = vmatpush1.msra.mxu0 %v130
  %161 = vmatprep.subr.mxu0 0.0
  %162 = vmatpush1.msra.mxu0 0.0
  %163 = vmatprep.subr.mxu0 0.0
  %164 = vmatpush1.msra.mxu0 0.0
  %165 = vmatprep.subr.mxu0 0.0
  %166 = vmatpush1.msra.mxu0 0.0
  %167 = vmatprep.subr.mxu0 0.0
  %168 = vmatpush1.msra.mxu0 0.0
  %169 = vmatprep.subr.mxu0 0.0
  %170 = vmatpush1.msra.mxu0 0.0
  %171 = vmatprep.subr.mxu0 0.0
  %172 = vmatpush1.msra.mxu0 0.0
  %173 = vmatprep.subr.mxu0 0.0
  %174 = vmatpush1.msra.mxu0 0.0
  %175 = vmatprep.subr.mxu0 0.0
  %176 = vmatpush1.msra.mxu0 0.0
  %177 = vmatprep.subr.mxu0 0.0
  %178 = vmatpush1.msra.mxu0 0.0
  %179 = vmatprep.subr.mxu0 0.0
  %180 = vmatpush1.msra.mxu0 0.0
  %181 = vmatprep.subr.mxu0 0.0
  %182 = vmatpush1.msra.mxu0 0.0
  %183 = vmatprep.subr.mxu0 0.0
  %184 = vmatpush1.msra.mxu0 0.0
  %185 = vmatprep.subr.mxu0 0.0
  %186 = vmatpush1.msra.mxu0 0.0
  %187 = vmatprep.subr.mxu0 0.0
  %188 = vmatpush1.msra.mxu0 0.0
  %189 = vmatprep.subr.mxu0 0.0
  %190 = vmatpush1.msra.mxu0 0.0
  %191 = vmatprep.subr.mxu0 0.0
  %192 = vmatpush1.msra.mxu0 0.0
  %193 = vmatprep.subr.mxu0 0.0
  %194 = vmatpush1.msra.mxu0 0.0
  %195 = vmatprep.subr.mxu0 0.0
  %196 = vmatpush1.msra.mxu0 0.0
  %197 = vmatprep.subr.mxu0 0.0
  %198 = vmatpush1.msra.mxu0 0.0
  %199 = vmatprep.subr.mxu0 0.0
  %200 = vmatpush1.msra.mxu0 0.0
  %201 = vmatprep.subr.mxu0 0.0
  %202 = vmatpush1.msra.mxu0 0.0
  %203 = vmatprep.subr.mxu0 0.0
  %204 = vmatpush1.msra.mxu0 0.0
  %205 = vmatprep.subr.mxu0 0.0
  %206 = vmatpush1.msra.mxu0 0.0
  %207 = vmatprep.subr.mxu0 0.0
  %208 = vmatpush1.msra.mxu0 0.0
  %209 = vmatprep.mubr.f32.mxu0 0.0
  %210 = vmatmul.mubr.f32.gmra.mrb[0].mxu0 %v140
  %v211 = vpop.f32.mrb[0].mxu0
  %v212 = vadd.f32 %v136, %v211
  %v213 = vpop.f32.mrb[0].mxu0
  %214 = vmatprep.mubr.f32.mxu0 0.0
  %215 = vmatmul.mubr.f32.gmra.mrb[0].mxu0 %v143
  %v216 = vpop.f32.mrb[0].mxu0
  %v217 = vadd.f32 %v136, %v216
  %v218 = vpop.f32.mrb[0].mxu0
  %219 = vdwg.mxu0
  %v220 = vmax.f32 %v212, 0.0
  %v221 = vmax.f32 %v217, 0.0
  %v222 = vld [vmem:[%s5] sm:$0xff]
  %v223 = vld [vmem:[%s5 + $0x8] sm:$0xff]
  %v224 = vld [vmem:[%s5 + $0x10] sm:$0xff]
  %v225 = vld [vmem:[%s5 + $0x18] sm:$0xff]
  %v226 = vld [vmem:[%s6] sm:$0x1]
  %v228 = vlaneseq
  %v229 = vshrl.u32 %v228, 7
  %v230 = vsub.s32 0, %v229
  %v231 = vrot.slane %v226, %v230
  %v234 = vsel %vm39, %v220, 0
  %v237 = vsel %vm39, %v221, 0
  %239 = vmatprep.subr.mxu0 0.0
  %240 = vmatpush1.msra.mxu0 %v222
  %241 = vmatprep.subr.mxu0 0.0
  %242 = vmatpush1.msra.mxu0 %v223
  %243 = vmatprep.subr.mxu0 0.0
  %244 = vmatpush1.msra.mxu0 %v224
  %245 = vmatprep.subr.mxu0 0.0
  %246 = vmatpush1.msra.mxu0 %v225
  %247 = vmatprep.subr.mxu0 0.0
  %248 = vmatpush1.msra.mxu0 0.0
  %249 = vmatprep.subr.mxu0 0.0
  %250 = vmatpush1.msra.mxu0 0.0
  %251 = vmatprep.subr.mxu0 0.0
  %252 = vmatpush1.msra.mxu0 0.0
  %253 = vmatprep.subr.mxu0 0.0
  %254 = vmatpush1.msra.mxu0 0.0
  %255 = vmatprep.subr.mxu0 0.0
  %256 = vmatpush1.msra.mxu0 0.0
  %257 = vmatprep.subr.mxu0 0.0
  %258 = vmatpush1.msra.mxu0 0.0
  %259 = vmatprep.subr.mxu0 0.0
  %260 = vmatpush1.msra.mxu0 0.0
  %261 = vmatprep.subr.mxu0 0.0
  %262 = vmatpush1.msra.mxu0 0.0
  %263 = vmatprep.subr.mxu0 0.0
  %264 = vmatpush1.msra.mxu0 0.0
  %265 = vmatprep.subr.mxu0 0.0
  %266 = vmatpush1.msra.mxu0 0.0
  %267 = vmatprep.subr.mxu0 0.0
  %268 = vmatpush1.msra.mxu0 0.0
  %269 = vmatprep.subr.mxu0 0.0
  %270 = vmatpush1.msra.mxu0 0.0
  %271 = vmatprep.subr.mxu0 0.0
  %272 = vmatpush1.msra.mxu0 0.0
  %273 = vmatprep.subr.mxu0 0.0
  %274 = vmatpush1.msra.mxu0 0.0
  %275 = vmatprep.subr.mxu0 0.0
  %276 = vmatpush1.msra.mxu0 0.0
  %277 = vmatprep.subr.mxu0 0.0
  %278 = vmatpush1.msra.mxu0 0.0
  %279 = vmatprep.subr.mxu0 0.0
  %280 = vmatpush1.msra.mxu0 0.0
  %281 = vmatprep.subr.mxu0 0.0
  %282 = vmatpush1.msra.mxu0 0.0
  %283 = vmatprep.subr.mxu0 0.0
  %284 = vmatpush1.msra.mxu0 0.0
  %285 = vmatprep.subr.mxu0 0.0
  %286 = vmatpush1.msra.mxu0 0.0
  %287 = vmatprep.subr.mxu0 0.0
  %288 = vmatpush1.msra.mxu0 0.0
  %289 = vmatprep.subr.mxu0 0.0
  %290 = vmatpush1.msra.mxu0 0.0
  %291 = vmatprep.subr.mxu0 0.0
  %292 = vmatpush1.msra.mxu0 0.0
  %293 = vmatprep.subr.mxu0 0.0
  %294 = vmatpush1.msra.mxu0 0.0
  %295 = vmatprep.subr.mxu0 0.0
  %296 = vmatpush1.msra.mxu0 0.0
  %297 = vmatprep.subr.mxu0 0.0
  %298 = vmatpush1.msra.mxu0 0.0
  %299 = vmatprep.subr.mxu0 0.0
  %300 = vmatpush1.msra.mxu0 0.0
  %301 = vmatprep.subr.mxu0 0.0
  %302 = vmatpush1.msra.mxu0 0.0
  %303 = vmatprep.mubr.f32.mxu0 0.0
  %304 = vmatmul.mubr.f32.gmra.mrb[0].mxu0 %v234
  %v305 = vpop.f32.mrb[0].mxu0
  %v306 = vadd.f32 %v231, %v305
  %v307 = vpop.f32.mrb[0].mxu0
  %308 = vmatprep.mubr.f32.mxu0 0.0
  %309 = vmatmul.mubr.f32.gmra.mrb[0].mxu0 %v237
  %v310 = vpop.f32.mrb[0].mxu0
  %v311 = vadd.f32 %v231, %v310
  %v312 = vpop.f32.mrb[0].mxu0
  %313 = vdwg.mxu0
  %v314 = vtanh.pop %v306
  %v315 = vtanh.pop %v311
  %vm316 = vcmask 64512
  %317 = vst.msk [vmem:[%s7] sm:$0xff] %vm316, %v314
  %318 = vst.msk [vmem:[%s7 + $0x8] sm:$0xff] %vm316, %v315
  // Predicated region
  $region30: #{tpu_custom_call.1} parent=0 // pred_check
    _
  $region31: #{tpu_custom_call.1} parent=0 // pred_check_branch
    %320 = sbr.rel (0) target = $region33
  $region32: #{tpu_custom_call.1} parent=0 // pred_region
    _
  $region33: #{tpu_custom_call.1} parent=0 // pred_fallthru
    _
  // Predicated region
  $region34: #{tpu_custom_call.1} parent=0 // pred_check
    _
  $region35: #{tpu_custom_call.1} parent=0 // pred_check_branch
    %322 = sbr.rel (0) target = $region37
  $region36: #{tpu_custom_call.1} parent=0 // pred_region
    _
  $region37: #{tpu_custom_call.1} parent=0 // pred_fallthru
    _

</llo_original>
